<compile_context>
chip_gen: v6e
topology: v6e:2x2x1
jax: 0.10.0
libtpu: 0.0.40
codegen_flags: <defaults>
</compile_context>

<pallas_src>
import functools

import numpy as np
import jax
import jax.numpy as jnp
from jax.experimental import pallas as pl
from jax.experimental.pallas import tpu as pltpu


# ----------------------------------------------------------------------------
# Host-side: PIL-style antialiased bilinear interpolation matrix.
# ----------------------------------------------------------------------------
def _triangle(x):
    ax = np.abs(x)
    return np.where(ax < 1.0, 1.0 - ax, 0.0)


def pil_bilinear_matrix(in_size: int, out_size: int) -> np.ndarray:
    """W of shape (out_size, in_size) s.t. out = W @ in reproduces PIL's
    antialiased bilinear resize along one axis."""
    w = np.zeros((out_size, in_size), dtype=np.float32)
    scale = in_size / out_size
    filterscale = max(scale, 1.0)
    support = 1.0 * filterscale  # bilinear filter support
    for o in range(out_size):
        center = (o + 0.5) * scale
        xmin = max(int(center - support + 0.5), 0)
        xmax = min(int(center + support + 0.5), in_size)
        xs = np.arange(xmin, xmax)
        ww = _triangle((xs + 0.5 - center) / filterscale)
        s = ww.sum()
        if s > 0:
            ww = ww / s
        w[o, xmin:xmax] = ww
    return w


def _host_crop_offset(key, hi: int) -> int:
    """Deterministic crop offset in [0, hi) derived from the PRNG key on the
    host (numpy) — no device computation / blocking sync."""
    if hi <= 1:
        return 0
    if jnp.issubdtype(key.dtype, jax.dtypes.prng_key):
        kd = jax.random.key_data(key)
    else:
        kd = key
    seed = int(np.asarray(kd).astype(np.uint64).sum() & np.uint64(0x7FFFFFFF))
    return int(np.random.default_rng(seed).integers(0, hi))


# ----------------------------------------------------------------------------
# Pallas kernel: B slabs per grid step, two MXU matmuls per slab.
#   width_first:  tmp = x @ WxT (one big (B*H_in, W_in) matmul), out = Wh @ tmp
#   height_first: tmp = Wh @ x,  out = tmp @ WxT   (per slab)
# ----------------------------------------------------------------------------
def _resize_kernel(x_ref, wh_ref, wxt_ref, o_ref, *, width_first: bool):
    B, h_in, w_in = x_ref.shape
    xw = wxt_ref.shape[1]

    wh = wh_ref[...]                                     # (height, h_in) bf16
    wxt = wxt_ref[...]                                   # (w_in, xw)     bf16

    if width_first:
        # One large MXU matmul over all slabs for the width contraction.
        x2 = x_ref[...].reshape(B * h_in, w_in)          # bf16
        tmp = jnp.dot(x2, wxt, preferred_element_type=jnp.float32)
        tmp = tmp.reshape(B, h_in, xw).astype(jnp.bfloat16)
        for b in range(B):                               # static unroll, small B
            o_ref[b] = jnp.dot(wh, tmp[b],
                               preferred_element_type=jnp.float32
                               ).astype(o_ref.dtype)
    else:
        x = x_ref[...]                                   # (B, h_in, w_in) bf16
        for b in range(B):
            t = jnp.dot(wh, x[b],
                        preferred_element_type=jnp.float32).astype(jnp.bfloat16)
            o_ref[b] = jnp.dot(t, wxt,
                               preferred_element_type=jnp.float32
                               ).astype(o_ref.dtype)


# ----------------------------------------------------------------------------
# Wrapper
# ----------------------------------------------------------------------------
def resize_and_crop(image: jax.Array, height: int, width: int,
                    key: jax.Array) -> jax.Array:
    """image: (N, C, H_in, W_in) float32, NCHW layout."""
    n, c, h_in, w_in = image.shape
    out_dtype = image.dtype

    # Resize: height -> `height`, width scaled proportionally.
    new_w = int(height / h_in * w_in)

    # Crop (width only; height already equals target).
    if new_w > width:
        crop_w = width
        x0 = _host_crop_offset(key, new_w - width + 1)
    else:
        crop_w = new_w
        x0 = 0

    # Lane-dense padded output width (multiple of 128) — sliced off afterwards.
    xw = max(128, ((crop_w + 127) // 128) * 128)

    wh_np = pil_bilinear_matrix(h_in, height)                      # (height, h_in)
    wx_np = pil_bilinear_matrix(w_in, new_w)[x0:x0 + crop_w, :]    # (crop_w, w_in)
    wxt_np = np.zeros((w_in, xw), dtype=np.float32)
    wxt_np[:, :crop_w] = wx_np.T
    wh = jnp.asarray(wh_np, dtype=jnp.bfloat16)
    wxt = jnp.asarray(wxt_np, dtype=jnp.bfloat16)

    # VMEM-aware number of (n*c) slabs per grid step (double-buffered in+out
    # blocks must fit comfortably even on v7x's 64 MiB VMEM).
    nc = n * c
    in_bytes = h_in * w_in * 2                                     # bf16 slab
    out_bytes = height * xw * jnp.dtype(out_dtype).itemsize
    budget = 24 * 1024 * 1024
    b_max = max(1, budget // (2 * (in_bytes + out_bytes)))
    blk = int(min(32, nc, b_max))
    nc_pad = -(-nc // blk) * blk

    x_flat = image.reshape(nc, h_in, w_in).astype(jnp.bfloat16)
    if nc_pad != nc:
        x_flat = jnp.pad(x_flat, ((0, nc_pad - nc), (0, 0), (0, 0)))

    # Pick matmul order at trace time (minimize FLOPs / live intermediate).
    cost_height_first = height * w_in * (h_in + crop_w)
    cost_width_first = h_in * crop_w * (w_in + height)
    width_first = cost_width_first <= cost_height_first

    kernel = functools.partial(_resize_kernel, width_first=width_first)

    out_flat = pl.pallas_call(
        kernel,
        out_shape=jax.ShapeDtypeStruct((nc_pad, height, xw), out_dtype),
        grid_spec=pltpu.PrefetchScalarGridSpec(
            num_scalar_prefetch=0,
            grid=(nc_pad // blk,),
            in_specs=[
                pl.BlockSpec((blk, h_in, w_in), lambda i: (i, 0, 0)),
                pl.BlockSpec((height, h_in), lambda i: (0, 0)),
                pl.BlockSpec((w_in, xw), lambda i: (0, 0)),
            ],
            out_specs=pl.BlockSpec((blk, height, xw), lambda i: (i, 0, 0)),
        ),
        compiler_params=pltpu.CompilerParams(
            dimension_semantics=("parallel",),
            vmem_limit_bytes=48 * 1024 * 1024),
    )(x_flat, wh, wxt)

    out = out_flat[:nc, :, :crop_w]
    return out.reshape(n, c, height, crop_w)


# ----------------------------------------------------------------------------
# Self-test
# ----------------------------------------------------------------------------
if __name__ == "__main__":
    key = jax.random.PRNGKey(0)
    k_img, k_crop = jax.random.split(key)

    N, C, H_IN, W_IN = 2, 4, 16, 24
    TARGET_H, TARGET_W = 8, 6

    image = jax.random.uniform(k_img, (N, C, H_IN, W_IN), dtype=jnp.float32)

    out = resize_and_crop(image, TARGET_H, TARGET_W, k_crop)
    out = jax.block_until_ready(out)

    # Float32 reference with the identical interpolation matrices and the same
    # deterministic crop offset (tolerance relaxed for bf16 MXU inputs).
    new_w = int(TARGET_H / H_IN * W_IN)
    if new_w > TARGET_W:
        crop_w = TARGET_W
        x0 = _host_crop_offset(k_crop, new_w - TARGET_W + 1)
    else:
        crop_w = new_w
        x0 = 0
    wh_f32 = pil_bilinear_matrix(H_IN, TARGET_H)
    wxt_f32 = pil_bilinear_matrix(W_IN, new_w)[x0:x0 + crop_w, :].T
    ref = np.einsum('oh,nchw,wx->ncox', wh_f32,
                    np.asarray(image, dtype=np.float32), wxt_f32)

    assert out.shape == (N, C, TARGET_H, crop_w), out.shape
    np.testing.assert_allclose(np.asarray(out), ref, rtol=2e-2, atol=2e-2)

    # TODO(synk): PIL also quantizes to uint8 when operating on PIL images;
    # this kernel keeps tensor-mode float semantics throughout.
    print("KERNEL_OK")
</pallas_src>

<mosaic_0001>
module attributes {stable_mosaic.version = 11 : i64} {
  func.func @_resize_kernel(%arg0: i32, %arg1: memref<8x16x24xbf16, #tpu.memory_space<vmem>>, %arg2: memref<8x16xbf16, #tpu.memory_space<vmem>>, %arg3: memref<24x128xbf16, #tpu.memory_space<vmem>>, %arg4: memref<8x8x128xf32, #tpu.memory_space<vmem>>) attributes {dimension_semantics = [#tpu.dimension_semantics<parallel>], iteration_bounds = array<i64: 1>, scalar_prefetch = 0 : i64, scratch_operands = 0 : i64, tpu.core_type = #tpu.core_type<tc>, window_params = [{transform_indices = @transform_0, window_bounds = array<i64: 8, 16, 24>}, {pipeline_mode = #tpu.pipeline_mode<synchronous>, transform_indices = @transform_1, window_bounds = array<i64: 8, 16>}, {pipeline_mode = #tpu.pipeline_mode<synchronous>, transform_indices = @transform_2, window_bounds = array<i64: 24, 128>}, {transform_indices = @transform_3, window_bounds = array<i64: 8, 8, 128>}]} {
    %c0 = arith.constant 0 : index
    %c0_0 = arith.constant 0 : index
    %0 = vector.load %arg2[%c0, %c0_0] : memref<8x16xbf16, #tpu.memory_space<vmem>>, vector<8x16xbf16>
    %c0_1 = arith.constant 0 : index
    %c0_2 = arith.constant 0 : index
    %1 = vector.load %arg3[%c0_1, %c0_2] : memref<24x128xbf16, #tpu.memory_space<vmem>>, vector<24x128xbf16>
    %c0_3 = arith.constant 0 : index
    %c0_4 = arith.constant 0 : index
    %c0_5 = arith.constant 0 : index
    %2 = vector.load %arg1[%c0_3, %c0_4, %c0_5] : memref<8x16x24xbf16, #tpu.memory_space<vmem>>, vector<8x16x24xbf16>
    %3 = vector.shape_cast %2 : vector<8x16x24xbf16> to vector<128x24xbf16>
    %cst = arith.constant dense<0.000000e+00> : vector<128x128xf32>
    %4 = tpu.matmul %3, %1, %cst {dimension_numbers = #tpu.dot_dimension_numbers<[1], [0], [0], [1], [0, 0, 1, 1], [], []>} : vector<128x24xbf16>, vector<24x128xbf16>, vector<128x128xf32> -> vector<128x128xf32>
    %5 = vector.shape_cast %4 : vector<128x128xf32> to vector<8x16x128xf32>
    %6 = arith.truncf %5 : vector<8x16x128xf32> to vector<8x16x128xbf16>
    %7 = vector.extract_strided_slice %6 {offsets = [0, 0, 0], sizes = [1, 16, 128], strides = [1, 1, 1]} : vector<8x16x128xbf16> to vector<1x16x128xbf16>
    %8 = vector.shape_cast %7 : vector<1x16x128xbf16> to vector<16x128xbf16>
    %cst_6 = arith.constant dense<0.000000e+00> : vector<8x128xf32>
    %9 = tpu.matmul %0, %8, %cst_6 {dimension_numbers = #tpu.dot_dimension_numbers<[1], [0], [0], [1], [0, 0, 1, 1], [], []>} : vector<8x16xbf16>, vector<16x128xbf16>, vector<8x128xf32> -> vector<8x128xf32>
    %c0_7 = arith.constant 0 : index
    %c0_8 = arith.constant 0 : index
    %c0_9 = arith.constant 0 : index
    %10 = vector.load %arg4[%c0_7, %c0_8, %c0_9] : memref<8x8x128xf32, #tpu.memory_space<vmem>>, vector<1x8x128xf32>
    %11 = vector.shape_cast %10 : vector<1x8x128xf32> to vector<8x128xf32>
    %12 = vector.shape_cast %9 : vector<8x128xf32> to vector<1x8x128xf32>
    tpu.vector_store %arg4[%c0_7, %c0_8, %c0_9], %12 {strides = array<i32>} : memref<8x8x128xf32, #tpu.memory_space<vmem>>, vector<1x8x128xf32>,
    %13 = vector.extract_strided_slice %6 {offsets = [1, 0, 0], sizes = [1, 16, 128], strides = [1, 1, 1]} : vector<8x16x128xbf16> to vector<1x16x128xbf16>
    %14 = vector.shape_cast %13 : vector<1x16x128xbf16> to vector<16x128xbf16>
    %cst_10 = arith.constant dense<0.000000e+00> : vector<8x128xf32>
    %15 = tpu.matmul %0, %14, %cst_10 {dimension_numbers = #tpu.dot_dimension_numbers<[1], [0], [0], [1], [0, 0, 1, 1], [], []>} : vector<8x16xbf16>, vector<16x128xbf16>, vector<8x128xf32> -> vector<8x128xf32>
    %c1 = arith.constant 1 : index
    %c0_11 = arith.constant 0 : index
    %c0_12 = arith.constant 0 : index
    %16 = vector.load %arg4[%c1, %c0_11, %c0_12] : memref<8x8x128xf32, #tpu.memory_space<vmem>>, vector<1x8x128xf32>
    %17 = vector.shape_cast %16 : vector<1x8x128xf32> to vector<8x128xf32>
    %18 = vector.shape_cast %15 : vector<8x128xf32> to vector<1x8x128xf32>
    tpu.vector_store %arg4[%c1, %c0_11, %c0_12], %18 {strides = array<i32>} : memref<8x8x128xf32, #tpu.memory_space<vmem>>, vector<1x8x128xf32>,
    %19 = vector.extract_strided_slice %6 {offsets = [2, 0, 0], sizes = [1, 16, 128], strides = [1, 1, 1]} : vector<8x16x128xbf16> to vector<1x16x128xbf16>
    %20 = vector.shape_cast %19 : vector<1x16x128xbf16> to vector<16x128xbf16>
    %cst_13 = arith.constant dense<0.000000e+00> : vector<8x128xf32>
    %21 = tpu.matmul %0, %20, %cst_13 {dimension_numbers = #tpu.dot_dimension_numbers<[1], [0], [0], [1], [0, 0, 1, 1], [], []>} : vector<8x16xbf16>, vector<16x128xbf16>, vector<8x128xf32> -> vector<8x128xf32>
    %c2 = arith.constant 2 : index
    %c0_14 = arith.constant 0 : index
    %c0_15 = arith.constant 0 : index
    %22 = vector.load %arg4[%c2, %c0_14, %c0_15] : memref<8x8x128xf32, #tpu.memory_space<vmem>>, vector<1x8x128xf32>
    %23 = vector.shape_cast %22 : vector<1x8x128xf32> to vector<8x128xf32>
    %24 = vector.shape_cast %21 : vector<8x128xf32> to vector<1x8x128xf32>
    tpu.vector_store %arg4[%c2, %c0_14, %c0_15], %24 {strides = array<i32>} : memref<8x8x128xf32, #tpu.memory_space<vmem>>, vector<1x8x128xf32>,
    %25 = vector.extract_strided_slice %6 {offsets = [3, 0, 0], sizes = [1, 16, 128], strides = [1, 1, 1]} : vector<8x16x128xbf16> to vector<1x16x128xbf16>
    %26 = vector.shape_cast %25 : vector<1x16x128xbf16> to vector<16x128xbf16>
    %cst_16 = arith.constant dense<0.000000e+00> : vector<8x128xf32>
    %27 = tpu.matmul %0, %26, %cst_16 {dimension_numbers = #tpu.dot_dimension_numbers<[1], [0], [0], [1], [0, 0, 1, 1], [], []>} : vector<8x16xbf16>, vector<16x128xbf16>, vector<8x128xf32> -> vector<8x128xf32>
    %c3 = arith.constant 3 : index
    %c0_17 = arith.constant 0 : index
    %c0_18 = arith.constant 0 : index
    %28 = vector.load %arg4[%c3, %c0_17, %c0_18] : memref<8x8x128xf32, #tpu.memory_space<vmem>>, vector<1x8x128xf32>
    %29 = vector.shape_cast %28 : vector<1x8x128xf32> to vector<8x128xf32>
    %30 = vector.shape_cast %27 : vector<8x128xf32> to vector<1x8x128xf32>
    tpu.vector_store %arg4[%c3, %c0_17, %c0_18], %30 {strides = array<i32>} : memref<8x8x128xf32, #tpu.memory_space<vmem>>, vector<1x8x128xf32>,
    %31 = vector.extract_strided_slice %6 {offsets = [4, 0, 0], sizes = [1, 16, 128], strides = [1, 1, 1]} : vector<8x16x128xbf16> to vector<1x16x128xbf16>
    %32 = vector.shape_cast %31 : vector<1x16x128xbf16> to vector<16x128xbf16>
    %cst_19 = arith.constant dense<0.000000e+00> : vector<8x128xf32>
    %33 = tpu.matmul %0, %32, %cst_19 {dimension_numbers = #tpu.dot_dimension_numbers<[1], [0], [0], [1], [0, 0, 1, 1], [], []>} : vector<8x16xbf16>, vector<16x128xbf16>, vector<8x128xf32> -> vector<8x128xf32>
    %c4 = arith.constant 4 : index
    %c0_20 = arith.constant 0 : index
    %c0_21 = arith.constant 0 : index
    %34 = vector.load %arg4[%c4, %c0_20, %c0_21] : memref<8x8x128xf32, #tpu.memory_space<vmem>>, vector<1x8x128xf32>
    %35 = vector.shape_cast %34 : vector<1x8x128xf32> to vector<8x128xf32>
    %36 = vector.shape_cast %33 : vector<8x128xf32> to vector<1x8x128xf32>
    tpu.vector_store %arg4[%c4, %c0_20, %c0_21], %36 {strides = array<i32>} : memref<8x8x128xf32, #tpu.memory_space<vmem>>, vector<1x8x128xf32>,
    %37 = vector.extract_strided_slice %6 {offsets = [5, 0, 0], sizes = [1, 16, 128], strides = [1, 1, 1]} : vector<8x16x128xbf16> to vector<1x16x128xbf16>
    %38 = vector.shape_cast %37 : vector<1x16x128xbf16> to vector<16x128xbf16>
    %cst_22 = arith.constant dense<0.000000e+00> : vector<8x128xf32>
    %39 = tpu.matmul %0, %38, %cst_22 {dimension_numbers = #tpu.dot_dimension_numbers<[1], [0], [0], [1], [0, 0, 1, 1], [], []>} : vector<8x16xbf16>, vector<16x128xbf16>, vector<8x128xf32> -> vector<8x128xf32>
    %c5 = arith.constant 5 : index
    %c0_23 = arith.constant 0 : index
    %c0_24 = arith.constant 0 : index
    %40 = vector.load %arg4[%c5, %c0_23, %c0_24] : memref<8x8x128xf32, #tpu.memory_space<vmem>>, vector<1x8x128xf32>
    %41 = vector.shape_cast %40 : vector<1x8x128xf32> to vector<8x128xf32>
    %42 = vector.shape_cast %39 : vector<8x128xf32> to vector<1x8x128xf32>
    tpu.vector_store %arg4[%c5, %c0_23, %c0_24], %42 {strides = array<i32>} : memref<8x8x128xf32, #tpu.memory_space<vmem>>, vector<1x8x128xf32>,
    %43 = vector.extract_strided_slice %6 {offsets = [6, 0, 0], sizes = [1, 16, 128], strides = [1, 1, 1]} : vector<8x16x128xbf16> to vector<1x16x128xbf16>
    %44 = vector.shape_cast %43 : vector<1x16x128xbf16> to vector<16x128xbf16>
    %cst_25 = arith.constant dense<0.000000e+00> : vector<8x128xf32>
    %45 = tpu.matmul %0, %44, %cst_25 {dimension_numbers = #tpu.dot_dimension_numbers<[1], [0], [0], [1], [0, 0, 1, 1], [], []>} : vector<8x16xbf16>, vector<16x128xbf16>, vector<8x128xf32> -> vector<8x128xf32>
    %c6 = arith.constant 6 : index
    %c0_26 = arith.constant 0 : index
    %c0_27 = arith.constant 0 : index
    %46 = vector.load %arg4[%c6, %c0_26, %c0_27] : memref<8x8x128xf32, #tpu.memory_space<vmem>>, vector<1x8x128xf32>
    %47 = vector.shape_cast %46 : vector<1x8x128xf32> to vector<8x128xf32>
    %48 = vector.shape_cast %45 : vector<8x128xf32> to vector<1x8x128xf32>
    tpu.vector_store %arg4[%c6, %c0_26, %c0_27], %48 {strides = array<i32>} : memref<8x8x128xf32, #tpu.memory_space<vmem>>, vector<1x8x128xf32>,
    %49 = vector.extract_strided_slice %6 {offsets = [7, 0, 0], sizes = [1, 16, 128], strides = [1, 1, 1]} : vector<8x16x128xbf16> to vector<1x16x128xbf16>
    %50 = vector.shape_cast %49 : vector<1x16x128xbf16> to vector<16x128xbf16>
    %cst_28 = arith.constant dense<0.000000e+00> : vector<8x128xf32>
    %51 = tpu.matmul %0, %50, %cst_28 {dimension_numbers = #tpu.dot_dimension_numbers<[1], [0], [0], [1], [0, 0, 1, 1], [], []>} : vector<8x16xbf16>, vector<16x128xbf16>, vector<8x128xf32> -> vector<8x128xf32>
    %c7 = arith.constant 7 : index
    %c0_29 = arith.constant 0 : index
    %c0_30 = arith.constant 0 : index
    %52 = vector.load %arg4[%c7, %c0_29, %c0_30] : memref<8x8x128xf32, #tpu.memory_space<vmem>>, vector<1x8x128xf32>
    %53 = vector.shape_cast %52 : vector<1x8x128xf32> to vector<8x128xf32>
    %54 = vector.shape_cast %51 : vector<8x128xf32> to vector<1x8x128xf32>
    tpu.vector_store %arg4[%c7, %c0_29, %c0_30], %54 {strides = array<i32>} : memref<8x8x128xf32, #tpu.memory_space<vmem>>, vector<1x8x128xf32>,
    return
  }
  func.func @transform_0(%arg0: i32) -> (i32, i32, i32) {
    %c0_i32 = arith.constant 0 : i32
    %c0_i32_0 = arith.constant 0 : i32
    %c0_i32_1 = arith.constant 0 : i32
    return %arg0, %c0_i32, %c0_i32_0 : i32, i32, i32
  }
  func.func @transform_1(%arg0: i32) -> (i32, i32) {
    %c0_i32 = arith.constant 0 : i32
    %c0_i32_0 = arith.constant 0 : i32
    %c0_i32_1 = arith.constant 0 : i32
    return %c0_i32, %c0_i32_0 : i32, i32
  }
  func.func @transform_2(%arg0: i32) -> (i32, i32) {
    %c0_i32 = arith.constant 0 : i32
    %c0_i32_0 = arith.constant 0 : i32
    %c0_i32_1 = arith.constant 0 : i32
    return %c0_i32, %c0_i32_0 : i32, i32
  }
  func.func @transform_3(%arg0: i32) -> (i32, i32, i32) {
    %c0_i32 = arith.constant 0 : i32
    %c0_i32_0 = arith.constant 0 : i32
    %c0_i32_1 = arith.constant 0 : i32
    return %arg0, %c0_i32, %c0_i32_0 : i32, i32, i32
  }
}

</mosaic_0001>

<llo_original>
// kernel: tpu_custom_call.1
$region0: #{tpu_custom_call.1}
  #allocation0 [shape = 'u32[]', space=smem, size = 0x4, offset = 0x4, fixed_abs, tag = 'smem constant byte address 0x4 - core index']
  #allocation1 [shape = 'u32[144,128]{1,0:T(1,128)}', space=vmem, size = 0x12000, scoped, tag = 'internal scratch']
  %s0 = inlined_call_operand.hbm [shape: bf16[8,16,24], index: 0, kind: input, shape index: {}]
  %s1 = inlined_call_operand.hbm [shape: bf16[8,16], index: 1, kind: input, shape index: {}]
  %s2 = inlined_call_operand.hbm [shape: bf16[24,128], index: 2, kind: input, shape index: {}]
  %s3 = inlined_call_operand.hbm [shape: f32[8,8,128], index: 3, kind: output, shape index: {}]
  %s4 = sld [smem:[#allocation0]]
  $region34: #{tpu_custom_call.1} parent=0
    _
  %s6 = ssub.s32 1, %s4
  %s7 = scalar_select 0, %s6, %s4
  $region1: #{tpu_custom_call.1} parent=0
    #allocation2 [shape = 'u8[32768]{0}', space=vmem, size = 0x8000, scoped, tag = 'input window, operand 0, single buffered']
    #allocation3 [shape = 's32[1]{0}', space=sflag, size = 0x4, scoped, tag = 'scoped memory for tpu_custom_call.1']
    #allocation4 [shape = 's32[1]{0}', space=sflag, size = 0x4, scoped, tag = 'scoped memory for tpu_custom_call.1']
    #allocation5 [shape = 'u8[2048]{0}', space=vmem, size = 0x800, scoped, tag = 'input window, operand 1, single buffered']
    #allocation6 [shape = 's32[1]{0}', space=sflag, size = 0x4, scoped, tag = 'scoped memory for tpu_custom_call.1']
    #allocation7 [shape = 'u8[6144]{0}', space=vmem, size = 0x1800, scoped, tag = 'input window, operand 2, single buffered']
    #allocation8 [shape = 'u8[32768]{0}', space=vmem, size = 0x8000, scoped, tag = 'output window, operand 0, single buffered']
    %8 = vsyncpa [#allocation3], 0
    %9 = vsyncpa [#allocation6], 0
    %10 = vsyncpa [#allocation4], 0
    // Predicated region
    $region2: #{tpu_custom_call.1} parent=1 // pred_check
      _
    $region3: #{tpu_custom_call.1} parent=1 // pred_check_branch
      %12 = sbr.rel (0) target = $region5
    $region4: #{tpu_custom_call.1} parent=1 // pred_region
      %s14 = ssub.s32 1024, 1024
      %15 = vsyncadd [#allocation3], %s14
      %s16 = sshll.u32 [#allocation2], 4
      %s17 = int_to_ptr.vmem [resolvable:$true] %s16
      %22 = dma.hbm_to_vmem [thread:$0]  %s0, 1024, %s17, [#allocation3], 64, 64, 4
    $region5: #{tpu_custom_call.1} parent=1 // pred_fallthru
      _
    // Predicated region
    $region6: #{tpu_custom_call.1} parent=1 // pred_check
      _
    $region7: #{tpu_custom_call.1} parent=1 // pred_check_branch
      %24 = sbr.rel (0) target = $region9
    $region8: #{tpu_custom_call.1} parent=1 // pred_region
      %s26 = ssub.s32 64, 64
      %27 = vsyncadd [#allocation6], %s26
      %s29 = sshll.u32 [#allocation5], 4
      %s30 = int_to_ptr.vmem [resolvable:$true] %s29
      %32 = dma.hbm_to_vmem [thread:$0]  %s1, 64, %s30, [#allocation6]
    $region9: #{tpu_custom_call.1} parent=1 // pred_fallthru
      _
    // Predicated region
    $region10: #{tpu_custom_call.1} parent=1 // pred_check
      _
    $region11: #{tpu_custom_call.1} parent=1 // pred_check_branch
      %34 = sbr.rel (0) target = $region13
    $region12: #{tpu_custom_call.1} parent=1 // pred_region
      %s36 = ssub.s32 192, 192
      %37 = vsyncadd [#allocation6], %s36
      %s38 = sshll.u32 [#allocation7], 4
      %s39 = int_to_ptr.vmem [resolvable:$true] %s38
      %44 = dma.hbm_to_vmem [thread:$0]  %s2, 192, %s39, [#allocation6], 64, 64, 4
    $region13: #{tpu_custom_call.1} parent=1 // pred_fallthru
      _
    // Predicated region
    $region14: #{tpu_custom_call.1} parent=1 // pred_check
      _
    $region15: #{tpu_custom_call.1} parent=1 // pred_check_branch
      %46 = sbr.rel (0) target = $region17
    $region16: #{tpu_custom_call.1} parent=1 // pred_region
      %47 = dma.done [#allocation3], 1024
    $region17: #{tpu_custom_call.1} parent=1 // pred_fallthru
      _
    // Predicated region
    $region18: #{tpu_custom_call.1} parent=1 // pred_check
      _
    $region19: #{tpu_custom_call.1} parent=1 // pred_check_branch
      %49 = sbr.rel (0) target = $region21
    $region20: #{tpu_custom_call.1} parent=1 // pred_region
      %50 = dma.done [#allocation6], 64
    $region21: #{tpu_custom_call.1} parent=1 // pred_fallthru
      _
    // Predicated region
    $region22: #{tpu_custom_call.1} parent=1 // pred_check
      _
    $region23: #{tpu_custom_call.1} parent=1 // pred_check_branch
      %52 = sbr.rel (0) target = $region25
    $region24: #{tpu_custom_call.1} parent=1 // pred_region
      %53 = dma.done [#allocation6], 192
    $region25: #{tpu_custom_call.1} parent=1 // pred_fallthru
      _
    %v55 = vld [vmem:[#allocation5] sm:$0xf]
    %v56 = vld [vmem:[#allocation7] sm:$0xf]
    %v57 = vld [vmem:[#allocation7 + $0x4] sm:$0xf]
    %v58 = vld [vmem:[#allocation7 + $0x8] sm:$0xf]
    %v59 = vld [vmem:[#allocation2] sm:$0xf]
    %v60 = vld [vmem:[#allocation2 + $0x4] sm:$0xf]
    %v61 = vld [vmem:[#allocation2 + $0x8] sm:$0xf]
    %v62 = vld [vmem:[#allocation2 + $0xc] sm:$0xf]
    %v63 = vld [vmem:[#allocation2 + $0x10] sm:$0xf]
    %v64 = vld [vmem:[#allocation2 + $0x14] sm:$0xf]
    %v65 = vld [vmem:[#allocation2 + $0x18] sm:$0xf]
    %v66 = vld [vmem:[#allocation2 + $0x1c] sm:$0xf]
    %v67 = vld [vmem:[#allocation2 + $0x20] sm:$0xf]
    %v68 = vld [vmem:[#allocation2 + $0x24] sm:$0xf]
    %v69 = vld [vmem:[#allocation2 + $0x28] sm:$0xf]
    %v70 = vld [vmem:[#allocation2 + $0x2c] sm:$0xf]
    %v71 = vld [vmem:[#allocation2 + $0x30] sm:$0xf]
    %v72 = vld [vmem:[#allocation2 + $0x34] sm:$0xf]
    %v73 = vld [vmem:[#allocation2 + $0x38] sm:$0xf]
    %v74 = vld [vmem:[#allocation2 + $0x3c] sm:$0xf]
    %v91 = vunpack.c.l.b16 %v59
    %v92 = vunpack.c.l.b16 %v60
    %v93 = vunpack.c.l.b16 %v61
    %v94 = vunpack.c.l.b16 %v62
    %v95 = vunpack.c.l.b16 %v63
    %v96 = vunpack.c.l.b16 %v64
    %v97 = vunpack.c.l.b16 %v65
    %v98 = vunpack.c.l.b16 %v66
    %v99 = vunpack.c.l.b16 %v67
    %v100 = vunpack.c.l.b16 %v68
    %v101 = vunpack.c.l.b16 %v69
    %v102 = vunpack.c.l.b16 %v70
    %v103 = vunpack.c.l.b16 %v71
    %v104 = vunpack.c.l.b16 %v72
    %v105 = vunpack.c.l.b16 %v73
    %v106 = vunpack.c.l.b16 %v74
    %v107 = vpack.c.b16 %v92, %v91
    %v108 = vpack.c.b16 %v94, %v93
    %v109 = vpack.c.b16 %v96, %v95
    %v110 = vpack.c.b16 %v98, %v97
    %v111 = vpack.c.b16 %v100, %v99
    %v112 = vpack.c.b16 %v102, %v101
    %v113 = vpack.c.b16 %v104, %v103
    %v114 = vpack.c.b16 %v106, %v105
    %v118 = vunpack.c.l.b16 %v56
    %v119 = vunpack.c.l.b16 %v57
    %v120 = vunpack.c.l.b16 %v58
    %v121 = vpack.c.b16 %v119, %v118
    %v122 = vpack.c.b16 %v120, %v120
    %vm124 = vcmask 195584
    %v126 = vsel %vm124, %v107, 0
    %v129 = vsel %vm124, %v108, 0
    %v132 = vsel %vm124, %v109, 0
    %v135 = vsel %vm124, %v110, 0
    %v138 = vsel %vm124, %v111, 0
    %v141 = vsel %vm124, %v112, 0
    %v144 = vsel %vm124, %v113, 0
    %v147 = vsel %vm124, %v114, 0
    %vm149 = vcmask 1043456
    %v151 = vsel %vm149, %v122, 0
    %153 = vmatprep.subr.bf16.mxu0 0
    %154 = vmatpush1.bf16.msra.mxu0 0
    %155 = vmatprep.subr.bf16.mxu0 0
    %156 = vmatpush1.bf16.msra.mxu0 0
    %157 = vmatprep.subr.bf16.mxu0 0
    %158 = vmatpush1.bf16.msra.mxu0 0
    %159 = vmatprep.subr.bf16.mxu0 0
    %160 = vmatpush1.bf16.msra.mxu0 0
    %161 = vmatprep.subr.bf16.mxu0 0
    %162 = vmatpush1.bf16.msra.mxu0 0
    %163 = vmatprep.subr.bf16.mxu0 0
    %164 = vmatpush1.bf16.msra.mxu0 0
    %165 = vmatprep.subr.bf16.mxu0 0
    %166 = vmatpush1.bf16.msra.mxu0 %v151
    %167 = vmatprep.subr.bf16.mxu0 0
    %168 = vmatpush1.bf16.msra.mxu0 %v121
    %169 = vmatprep.subr.bf16.mxu0 0
    %170 = vmatpush2.bf16.msra.mxu0 0
    %171 = vmatprep.subr.bf16.mxu0 0
    %172 = vmatpush2.bf16.msra.mxu0 0
    %173 = vmatprep.subr.bf16.mxu0 0
    %174 = vmatpush2.bf16.msra.mxu0 0
    %175 = vmatprep.subr.bf16.mxu0 0
    %176 = vmatpush2.bf16.msra.mxu0 0
    %177 = vmatprep.subr.bf16.mxu0 0
    %178 = vmatpush2.bf16.msra.mxu0 0
    %179 = vmatprep.subr.bf16.mxu0 0
    %180 = vmatpush2.bf16.msra.mxu0 0
    %181 = vmatprep.subr.bf16.mxu0 0
    %182 = vmatpush2.bf16.msra.mxu0 0
    %183 = vmatprep.subr.bf16.mxu0 0
    %184 = vmatpush2.bf16.msra.mxu0 0
    %185 = vmatprep.mubr.bf16.mxu0 0
    %186 = vmatmul.mubr.bf16.gmra.mxu0 %v126
    %v187 = vpop.f32.mrf.mxu0
    %v188 = vadd.f32 0.0, %v187
    %v189 = vpop.f32.mrf.mxu0
    %v190 = vpop.f32.mrf.mxu0
    %v191 = vadd.f32 0.0, %v190
    %v192 = vpop.f32.mrf.mxu0
    %193 = vmatprep.mubr.bf16.mxu0 0
    %194 = vmatmul.mubr.bf16.gmra.mxu0 %v129
    %v195 = vpop.f32.mrf.mxu0
    %v196 = vadd.f32 0.0, %v195
    %v197 = vpop.f32.mrf.mxu0
    %v198 = vpop.f32.mrf.mxu0
    %v199 = vadd.f32 0.0, %v198
    %v200 = vpop.f32.mrf.mxu0
    %201 = vmatprep.mubr.bf16.mxu0 0
    %202 = vmatmul.mubr.bf16.gmra.mxu0 %v132
    %v203 = vpop.f32.mrf.mxu0
    %v204 = vadd.f32 0.0, %v203
    %v205 = vpop.f32.mrf.mxu0
    %v206 = vpop.f32.mrf.mxu0
    %v207 = vadd.f32 0.0, %v206
    %v208 = vpop.f32.mrf.mxu0
    %209 = vmatprep.mubr.bf16.mxu0 0
    %210 = vmatmul.mubr.bf16.gmra.mxu0 %v135
    %v211 = vpop.f32.mrf.mxu0
    %v212 = vadd.f32 0.0, %v211
    %v213 = vpop.f32.mrf.mxu0
    %v214 = vpop.f32.mrf.mxu0
    %v215 = vadd.f32 0.0, %v214
    %v216 = vpop.f32.mrf.mxu0
    %217 = vmatprep.mubr.bf16.mxu0 0
    %218 = vmatmul.mubr.bf16.gmra.mxu0 %v138
    %v219 = vpop.f32.mrf.mxu0
    %v220 = vadd.f32 0.0, %v219
    %v221 = vpop.f32.mrf.mxu0
    %v222 = vpop.f32.mrf.mxu0
    %v223 = vadd.f32 0.0, %v222
    %v224 = vpop.f32.mrf.mxu0
    %225 = vmatprep.mubr.bf16.mxu0 0
    %226 = vmatmul.mubr.bf16.gmra.mxu0 %v141
    %v227 = vpop.f32.mrf.mxu0
    %v228 = vadd.f32 0.0, %v227
    %v229 = vpop.f32.mrf.mxu0
    %v230 = vpop.f32.mrf.mxu0
    %v231 = vadd.f32 0.0, %v230
    %v232 = vpop.f32.mrf.mxu0
    %233 = vmatprep.mubr.bf16.mxu0 0
    %234 = vmatmul.mubr.bf16.gmra.mxu0 %v144
    %v235 = vpop.f32.mrf.mxu0
    %v236 = vadd.f32 0.0, %v235
    %v237 = vpop.f32.mrf.mxu0
    %v238 = vpop.f32.mrf.mxu0
    %v239 = vadd.f32 0.0, %v238
    %v240 = vpop.f32.mrf.mxu0
    %241 = vmatprep.mubr.bf16.mxu0 0
    %242 = vmatmul.mubr.bf16.gmra.mxu0 %v147
    %v243 = vpop.f32.mrf.mxu0
    %v244 = vadd.f32 0.0, %v243
    %v245 = vpop.f32.mrf.mxu0
    %v246 = vpop.f32.mrf.mxu0
    %v247 = vadd.f32 0.0, %v246
    %v248 = vpop.f32.mrf.mxu0
    %249 = vdwg.mxu0
    %v250 = vpack.c.bf16 %v191, %v188
    %v251 = vpack.c.bf16 %v199, %v196
    %v252 = vpack.c.bf16 %v207, %v204
    %v253 = vpack.c.bf16 %v215, %v212
    %v254 = vpack.c.bf16 %v223, %v220
    %v255 = vpack.c.bf16 %v231, %v228
    %v256 = vpack.c.bf16 %v239, %v236
    %v257 = vpack.c.bf16 %v247, %v244
    %vm258 = vcmask 130048
    %v260 = vsel %vm258, %v55, 0
    %262 = vmatprep.subr.bf16.mxu0 0
    %263 = vmatpush1.bf16.msra.mxu0 0
    %264 = vmatprep.subr.bf16.mxu0 0
    %265 = vmatpush1.bf16.msra.mxu0 0
    %266 = vmatprep.subr.bf16.mxu0 0
    %267 = vmatpush1.bf16.msra.mxu0 0
    %268 = vmatprep.subr.bf16.mxu0 0
    %269 = vmatpush1.bf16.msra.mxu0 0
    %270 = vmatprep.subr.bf16.mxu0 0
    %271 = vmatpush1.bf16.msra.mxu0 0
    %272 = vmatprep.subr.bf16.mxu0 0
    %273 = vmatpush1.bf16.msra.mxu0 0
    %274 = vmatprep.subr.bf16.mxu0 0
    %275 = vmatpush1.bf16.msra.mxu0 0
    %276 = vmatprep.subr.bf16.mxu0 0
    %277 = vmatpush1.bf16.msra.mxu0 %v250
    %278 = vmatprep.subr.bf16.mxu0 0
    %279 = vmatpush2.bf16.msra.mxu0 0
    %280 = vmatprep.subr.bf16.mxu0 0
    %281 = vmatpush2.bf16.msra.mxu0 0
    %282 = vmatprep.subr.bf16.mxu0 0
    %283 = vmatpush2.bf16.msra.mxu0 0
    %284 = vmatprep.subr.bf16.mxu0 0
    %285 = vmatpush2.bf16.msra.mxu0 0
    %286 = vmatprep.subr.bf16.mxu0 0
    %287 = vmatpush2.bf16.msra.mxu0 0
    %288 = vmatprep.subr.bf16.mxu0 0
    %289 = vmatpush2.bf16.msra.mxu0 0
    %290 = vmatprep.subr.bf16.mxu0 0
    %291 = vmatpush2.bf16.msra.mxu0 0
    %292 = vmatprep.subr.bf16.mxu0 0
    %293 = vmatpush2.bf16.msra.mxu0 0
    %294 = vmatprep.mubr.bf16.mxu0 0
    %295 = vmatmul.mubr.bf16.gmra.mxu0 %v260
    %v296 = vpop.f32.mrf.mxu0
    %v297 = vadd.f32 0.0, %v296
    %v298 = vpop.f32.mrf.mxu0
    %v299 = vpop.f32.mrf.mxu0
    %v300 = vpop.f32.mrf.mxu0
    %301 = vdwg.mxu0
    %302 = vst [vmem:[#allocation8] sm:$0xff] %v297
    %303 = vmatprep.subr.bf16.mxu0 0
    %304 = vmatpush1.bf16.msra.mxu0 0
    %305 = vmatprep.subr.bf16.mxu0 0
    %306 = vmatpush1.bf16.msra.mxu0 0
    %307 = vmatprep.subr.bf16.mxu0 0
    %308 = vmatpush1.bf16.msra.mxu0 0
    %309 = vmatprep.subr.bf16.mxu0 0
    %310 = vmatpush1.bf16.msra.mxu0 0
    %311 = vmatprep.subr.bf16.mxu0 0
    %312 = vmatpush1.bf16.msra.mxu0 0
    %313 = vmatprep.subr.bf16.mxu0 0
    %314 = vmatpush1.bf16.msra.mxu0 0
    %315 = vmatprep.subr.bf16.mxu0 0
    %316 = vmatpush1.bf16.msra.mxu0 0
    %317 = vmatprep.subr.bf16.mxu0 0
    %318 = vmatpush1.bf16.msra.mxu0 %v251
    %319 = vmatprep.subr.bf16.mxu0 0
    %320 = vmatpush2.bf16.msra.mxu0 0
    %321 = vmatprep.subr.bf16.mxu0 0
    %322 = vmatpush2.bf16.msra.mxu0 0
    %323 = vmatprep.subr.bf16.mxu0 0
    %324 = vmatpush2.bf16.msra.mxu0 0
    %325 = vmatprep.subr.bf16.mxu0 0
    %326 = vmatpush2.bf16.msra.mxu0 0
    %327 = vmatprep.subr.bf16.mxu0 0
    %328 = vmatpush2.bf16.msra.mxu0 0
    %329 = vmatprep.subr.bf16.mxu0 0
    %330 = vmatpush2.bf16.msra.mxu0 0
    %331 = vmatprep.subr.bf16.mxu0 0
    %332 = vmatpush2.bf16.msra.mxu0 0
    %333 = vmatprep.subr.bf16.mxu0 0
    %334 = vmatpush2.bf16.msra.mxu0 0
    %335 = vmatprep.mubr.bf16.mxu0 0
    %336 = vmatmul.mubr.bf16.gmra.mxu0 %v260
    %v337 = vpop.f32.mrf.mxu0
    %v338 = vadd.f32 0.0, %v337
    %v339 = vpop.f32.mrf.mxu0
    %v340 = vpop.f32.mrf.mxu0
    %v341 = vpop.f32.mrf.mxu0
    %342 = vdwg.mxu0
    %s343 = scalar_lea.vmem [#allocation8], 8
    %344 = vst [vmem:[%s343] sm:$0xff] %v338
    %345 = vmatprep.subr.bf16.mxu0 0
    %346 = vmatpush1.bf16.msra.mxu0 0
    %347 = vmatprep.subr.bf16.mxu0 0
    %348 = vmatpush1.bf16.msra.mxu0 0
    %349 = vmatprep.subr.bf16.mxu0 0
    %350 = vmatpush1.bf16.msra.mxu0 0
    %351 = vmatprep.subr.bf16.mxu0 0
    %352 = vmatpush1.bf16.msra.mxu0 0
    %353 = vmatprep.subr.bf16.mxu0 0
    %354 = vmatpush1.bf16.msra.mxu0 0
    %355 = vmatprep.subr.bf16.mxu0 0
    %356 = vmatpush1.bf16.msra.mxu0 0
    %357 = vmatprep.subr.bf16.mxu0 0
    %358 = vmatpush1.bf16.msra.mxu0 0
    %359 = vmatprep.subr.bf16.mxu0 0
    %360 = vmatpush1.bf16.msra.mxu0 %v252
    %361 = vmatprep.subr.bf16.mxu0 0
    %362 = vmatpush2.bf16.msra.mxu0 0
    %363 = vmatprep.subr.bf16.mxu0 0
    %364 = vmatpush2.bf16.msra.mxu0 0
    %365 = vmatprep.subr.bf16.mxu0 0
    %366 = vmatpush2.bf16.msra.mxu0 0
    %367 = vmatprep.subr.bf16.mxu0 0
    %368 = vmatpush2.bf16.msra.mxu0 0
    %369 = vmatprep.subr.bf16.mxu0 0
    %370 = vmatpush2.bf16.msra.mxu0 0
    %371 = vmatprep.subr.bf16.mxu0 0
    %372 = vmatpush2.bf16.msra.mxu0 0
    %373 = vmatprep.subr.bf16.mxu0 0
    %374 = vmatpush2.bf16.msra.mxu0 0
    %375 = vmatprep.subr.bf16.mxu0 0
    %376 = vmatpush2.bf16.msra.mxu0 0
    %377 = vmatprep.mubr.bf16.mxu0 0
    %378 = vmatmul.mubr.bf16.gmra.mxu0 %v260
    %v379 = vpop.f32.mrf.mxu0
    %v380 = vadd.f32 0.0, %v379
    %v381 = vpop.f32.mrf.mxu0
    %v382 = vpop.f32.mrf.mxu0
    %v383 = vpop.f32.mrf.mxu0
    %384 = vdwg.mxu0
    %s385 = scalar_lea.vmem [#allocation8], 16
    %386 = vst [vmem:[%s385] sm:$0xff] %v380
    %387 = vmatprep.subr.bf16.mxu0 0
    %388 = vmatpush1.bf16.msra.mxu0 0
    %389 = vmatprep.subr.bf16.mxu0 0
    %390 = vmatpush1.bf16.msra.mxu0 0
    %391 = vmatprep.subr.bf16.mxu0 0
    %392 = vmatpush1.bf16.msra.mxu0 0
    %393 = vmatprep.subr.bf16.mxu0 0
    %394 = vmatpush1.bf16.msra.mxu0 0
    %395 = vmatprep.subr.bf16.mxu0 0
    %396 = vmatpush1.bf16.msra.mxu0 0
    %397 = vmatprep.subr.bf16.mxu0 0
    %398 = vmatpush1.bf16.msra.mxu0 0
    %399 = vmatprep.subr.bf16.mxu0 0
    %400 = vmatpush1.bf16.msra.mxu0 0
    %401 = vmatprep.subr.bf16.mxu0 0
    %402 = vmatpush1.bf16.msra.mxu0 %v253
    %403 = vmatprep.subr.bf16.mxu0 0
    %404 = vmatpush2.bf16.msra.mxu0 0
    %405 = vmatprep.subr.bf16.mxu0 0
    %406 = vmatpush2.bf16.msra.mxu0 0
    %407 = vmatprep.subr.bf16.mxu0 0
    %408 = vmatpush2.bf16.msra.mxu0 0
    %409 = vmatprep.subr.bf16.mxu0 0
    %410 = vmatpush2.bf16.msra.mxu0 0
    %411 = vmatprep.subr.bf16.mxu0 0
    %412 = vmatpush2.bf16.msra.mxu0 0
    %413 = vmatprep.subr.bf16.mxu0 0
    %414 = vmatpush2.bf16.msra.mxu0 0
    %415 = vmatprep.subr.bf16.mxu0 0
    %416 = vmatpush2.bf16.msra.mxu0 0
    %417 = vmatprep.subr.bf16.mxu0 0
    %418 = vmatpush2.bf16.msra.mxu0 0
    %419 = vmatprep.mubr.bf16.mxu0 0
    %420 = vmatmul.mubr.bf16.gmra.mxu0 %v260
    %v421 = vpop.f32.mrf.mxu0
    %v422 = vadd.f32 0.0, %v421
    %v423 = vpop.f32.mrf.mxu0
    %v424 = vpop.f32.mrf.mxu0
    %v425 = vpop.f32.mrf.mxu0
    %426 = vdwg.mxu0
    %s427 = scalar_lea.vmem [#allocation8], 24
    %428 = vst [vmem:[%s427] sm:$0xff] %v422
    %429 = vmatprep.subr.bf16.mxu0 0
    %430 = vmatpush1.bf16.msra.mxu0 0
    %431 = vmatprep.subr.bf16.mxu0 0
    %432 = vmatpush1.bf16.msra.mxu0 0
    %433 = vmatprep.subr.bf16.mxu0 0
    %434 = vmatpush1.bf16.msra.mxu0 0
    %435 = vmatprep.subr.bf16.mxu0 0
    %436 = vmatpush1.bf16.msra.mxu0 0
    %437 = vmatprep.subr.bf16.mxu0 0
    %438 = vmatpush1.bf16.msra.mxu0 0
    %439 = vmatprep.subr.bf16.mxu0 0
    %440 = vmatpush1.bf16.msra.mxu0 0
    %441 = vmatprep.subr.bf16.mxu0 0
    %442 = vmatpush1.bf16.msra.mxu0 0
    %443 = vmatprep.subr.bf16.mxu0 0
    %444 = vmatpush1.bf16.msra.mxu0 %v254
    %445 = vmatprep.subr.bf16.mxu0 0
    %446 = vmatpush2.bf16.msra.mxu0 0
    %447 = vmatprep.subr.bf16.mxu0 0
    %448 = vmatpush2.bf16.msra.mxu0 0
    %449 = vmatprep.subr.bf16.mxu0 0
    %450 = vmatpush2.bf16.msra.mxu0 0
    %451 = vmatprep.subr.bf16.mxu0 0
    %452 = vmatpush2.bf16.msra.mxu0 0
    %453 = vmatprep.subr.bf16.mxu0 0
    %454 = vmatpush2.bf16.msra.mxu0 0
    %455 = vmatprep.subr.bf16.mxu0 0
    %456 = vmatpush2.bf16.msra.mxu0 0
    %457 = vmatprep.subr.bf16.mxu0 0
    %458 = vmatpush2.bf16.msra.mxu0 0
    %459 = vmatprep.subr.bf16.mxu0 0
    %460 = vmatpush2.bf16.msra.mxu0 0
    %461 = vmatprep.mubr.bf16.mxu0 0
    %462 = vmatmul.mubr.bf16.gmra.mxu0 %v260
    %v463 = vpop.f32.mrf.mxu0
    %v464 = vadd.f32 0.0, %v463
    %v465 = vpop.f32.mrf.mxu0
    %v466 = vpop.f32.mrf.mxu0
    %v467 = vpop.f32.mrf.mxu0
    %468 = vdwg.mxu0
    %s469 = scalar_lea.vmem [#allocation8], 32
    %470 = vst [vmem:[%s469] sm:$0xff] %v464
    %471 = vmatprep.subr.bf16.mxu0 0
    %472 = vmatpush1.bf16.msra.mxu0 0
    %473 = vmatprep.subr.bf16.mxu0 0
    %474 = vmatpush1.bf16.msra.mxu0 0
    %475 = vmatprep.subr.bf16.mxu0 0
    %476 = vmatpush1.bf16.msra.mxu0 0
    %477 = vmatprep.subr.bf16.mxu0 0
    %478 = vmatpush1.bf16.msra.mxu0 0
    %479 = vmatprep.subr.bf16.mxu0 0
    %480 = vmatpush1.bf16.msra.mxu0 0
    %481 = vmatprep.subr.bf16.mxu0 0
    %482 = vmatpush1.bf16.msra.mxu0 0
    %483 = vmatprep.subr.bf16.mxu0 0
    %484 = vmatpush1.bf16.msra.mxu0 0
    %485 = vmatprep.subr.bf16.mxu0 0
    %486 = vmatpush1.bf16.msra.mxu0 %v255
    %487 = vmatprep.subr.bf16.mxu0 0
    %488 = vmatpush2.bf16.msra.mxu0 0
    %489 = vmatprep.subr.bf16.mxu0 0
    %490 = vmatpush2.bf16.msra.mxu0 0
    %491 = vmatprep.subr.bf16.mxu0 0
    %492 = vmatpush2.bf16.msra.mxu0 0
    %493 = vmatprep.subr.bf16.mxu0 0
    %494 = vmatpush2.bf16.msra.mxu0 0
    %495 = vmatprep.subr.bf16.mxu0 0
    %496 = vmatpush2.bf16.msra.mxu0 0
    %497 = vmatprep.subr.bf16.mxu0 0
    %498 = vmatpush2.bf16.msra.mxu0 0
    %499 = vmatprep.subr.bf16.mxu0 0
    %500 = vmatpush2.bf16.msra.mxu0 0
    %501 = vmatprep.subr.bf16.mxu0 0
    %502 = vmatpush2.bf16.msra.mxu0 0
    %503 = vmatprep.mubr.bf16.mxu0 0
    %504 = vmatmul.mubr.bf16.gmra.mxu0 %v260
    %v505 = vpop.f32.mrf.mxu0
    %v506 = vadd.f32 0.0, %v505
    %v507 = vpop.f32.mrf.mxu0
    %v508 = vpop.f32.mrf.mxu0
    %v509 = vpop.f32.mrf.mxu0
    %510 = vdwg.mxu0
    %s511 = scalar_lea.vmem [#allocation8], 40
    %512 = vst [vmem:[%s511] sm:$0xff] %v506
    %513 = vmatprep.subr.bf16.mxu0 0
    %514 = vmatpush1.bf16.msra.mxu0 0
    %515 = vmatprep.subr.bf16.mxu0 0
    %516 = vmatpush1.bf16.msra.mxu0 0
    %517 = vmatprep.subr.bf16.mxu0 0
    %518 = vmatpush1.bf16.msra.mxu0 0
    %519 = vmatprep.subr.bf16.mxu0 0
    %520 = vmatpush1.bf16.msra.mxu0 0
    %521 = vmatprep.subr.bf16.mxu0 0
    %522 = vmatpush1.bf16.msra.mxu0 0
    %523 = vmatprep.subr.bf16.mxu0 0
    %524 = vmatpush1.bf16.msra.mxu0 0
    %525 = vmatprep.subr.bf16.mxu0 0
    %526 = vmatpush1.bf16.msra.mxu0 0
    %527 = vmatprep.subr.bf16.mxu0 0
    %528 = vmatpush1.bf16.msra.mxu0 %v256
    %529 = vmatprep.subr.bf16.mxu0 0
    %530 = vmatpush2.bf16.msra.mxu0 0
    %531 = vmatprep.subr.bf16.mxu0 0
    %532 = vmatpush2.bf16.msra.mxu0 0
    %533 = vmatprep.subr.bf16.mxu0 0
    %534 = vmatpush2.bf16.msra.mxu0 0
    %535 = vmatprep.subr.bf16.mxu0 0
    %536 = vmatpush2.bf16.msra.mxu0 0
    %537 = vmatprep.subr.bf16.mxu0 0
    %538 = vmatpush2.bf16.msra.mxu0 0
    %539 = vmatprep.subr.bf16.mxu0 0
    %540 = vmatpush2.bf16.msra.mxu0 0
    %541 = vmatprep.subr.bf16.mxu0 0
    %542 = vmatpush2.bf16.msra.mxu0 0
    %543 = vmatprep.subr.bf16.mxu0 0
    %544 = vmatpush2.bf16.msra.mxu0 0
    %545 = vmatprep.mubr.bf16.mxu0 0
    %546 = vmatmul.mubr.bf16.gmra.mxu0 %v260
    %v547 = vpop.f32.mrf.mxu0
    %v548 = vadd.f32 0.0, %v547
    %v549 = vpop.f32.mrf.mxu0
    %v550 = vpop.f32.mrf.mxu0
    %v551 = vpop.f32.mrf.mxu0
    %552 = vdwg.mxu0
    %s553 = scalar_lea.vmem [#allocation8], 48
    %554 = vst [vmem:[%s553] sm:$0xff] %v548
    %555 = vmatprep.subr.bf16.mxu0 0
    %556 = vmatpush1.bf16.msra.mxu0 0
    %557 = vmatprep.subr.bf16.mxu0 0
    %558 = vmatpush1.bf16.msra.mxu0 0
    %559 = vmatprep.subr.bf16.mxu0 0
    %560 = vmatpush1.bf16.msra.mxu0 0
    %561 = vmatprep.subr.bf16.mxu0 0
    %562 = vmatpush1.bf16.msra.mxu0 0
    %563 = vmatprep.subr.bf16.mxu0 0
    %564 = vmatpush1.bf16.msra.mxu0 0
    %565 = vmatprep.subr.bf16.mxu0 0
    %566 = vmatpush1.bf16.msra.mxu0 0
    %567 = vmatprep.subr.bf16.mxu0 0
    %568 = vmatpush1.bf16.msra.mxu0 0
    %569 = vmatprep.subr.bf16.mxu0 0
    %570 = vmatpush1.bf16.msra.mxu0 %v257
    %571 = vmatprep.subr.bf16.mxu0 0
    %572 = vmatpush2.bf16.msra.mxu0 0
    %573 = vmatprep.subr.bf16.mxu0 0
    %574 = vmatpush2.bf16.msra.mxu0 0
    %575 = vmatprep.subr.bf16.mxu0 0
    %576 = vmatpush2.bf16.msra.mxu0 0
    %577 = vmatprep.subr.bf16.mxu0 0
    %578 = vmatpush2.bf16.msra.mxu0 0
    %579 = vmatprep.subr.bf16.mxu0 0
    %580 = vmatpush2.bf16.msra.mxu0 0
    %581 = vmatprep.subr.bf16.mxu0 0
    %582 = vmatpush2.bf16.msra.mxu0 0
    %583 = vmatprep.subr.bf16.mxu0 0
    %584 = vmatpush2.bf16.msra.mxu0 0
    %585 = vmatprep.subr.bf16.mxu0 0
    %586 = vmatpush2.bf16.msra.mxu0 0
    %587 = vmatprep.mubr.bf16.mxu0 0
    %588 = vmatmul.mubr.bf16.gmra.mxu0 %v260
    %v589 = vpop.f32.mrf.mxu0
    %v590 = vadd.f32 0.0, %v589
    %v591 = vpop.f32.mrf.mxu0
    %v592 = vpop.f32.mrf.mxu0
    %v593 = vpop.f32.mrf.mxu0
    %594 = vdwg.mxu0
    %s595 = scalar_lea.vmem [#allocation8], 56
    %596 = vst [vmem:[%s595] sm:$0xff] %v590
    // Predicated region
    $region26: #{tpu_custom_call.1} parent=1 // pred_check
      _
    $region27: #{tpu_custom_call.1} parent=1 // pred_check_branch
      %598 = sbr.rel (0) target = $region29
    $region28: #{tpu_custom_call.1} parent=1 // pred_region
      %s600 = ssub.s32 1024, 1024
      %601 = vsyncadd [#allocation4], %s600
      %s602 = sshll.u32 [#allocation8], 4
      %s603 = int_to_ptr.vmem [resolvable:$true] %s602
      %608 = dma.vmem_to_hbm [thread:$0]  %s603, 1024, %s3, [#allocation4], 128, 128, 8
    $region29: #{tpu_custom_call.1} parent=1 // pred_fallthru
      _
    // Predicated region
    $region30: #{tpu_custom_call.1} parent=1 // pred_check
      _
    $region31: #{tpu_custom_call.1} parent=1 // pred_check_branch
      %610 = sbr.rel (0) target = $region33
    $region32: #{tpu_custom_call.1} parent=1 // pred_region
      %611 = dma.done [#allocation4], 1024
    $region33: #{tpu_custom_call.1} parent=1 // pred_fallthru
      _
    %612 = vsyncpa [#allocation3], 1
    %613 = vsyncpa [#allocation6], 1
    %614 = vsyncpa [#allocation4], 1

</llo_original>
